<compile_context>
chip_gen: v5e
topology: v5e:2x2
jax: 0.10.0
libtpu: 0.0.40
codegen_flags: <defaults>
</compile_context>

<pallas_src>
import functools

import jax
import jax.numpy as jnp
from jax.experimental import pallas as pl
from jax.experimental.pallas import tpu as pltpu


NUM_CLASS = 10
D_IN, D_H1, D_H2 = 1024, 256, 64
LANE = 128
MAX_TB = 1024  # batch tile upper bound (~12 MiB VMEM at tb=1024 incl. buffers)


def _round_up(n, m):
    return ((n + m - 1) // m) * m


def _choose_tiles(B):
    """Pick (tile, padded_batch). 16-aligned rows (bf16 packs 2 rows/sublane
    downstream); >= 2 grid steps whenever the batch is big enough so v7x's two
    TensorCores both get work along the "parallel" axis."""
    b_al = _round_up(B, 16)
    if b_al < 32:
        return b_al, b_al                      # single tiny tile
    tb = min(MAX_TB, _round_up(pl.cdiv(b_al, 2), 16))
    bp = _round_up(b_al, tb)
    return tb, bp


# ---------------------------------------------------------------------------
# Kernels
# ---------------------------------------------------------------------------

def _mlp_core(x_ref, w1_ref, b1_ref, w2_ref, b2_ref, w3_ref, b3_ref):
    """Shared fused MLP body. Returns (logits_f32, pre-ReLU mlp1 output f32)."""
    # Cast to bf16 in-kernel: x streams from HBM once as f32, no extra XLA pass.
    x = x_ref[...].astype(jnp.bfloat16)                       # (TB, 1024)

    # mlp1: (TB, 1024) @ (1024, 256) -> f32 acc, + f32 bias
    h1 = jnp.dot(x, w1_ref[...], preferred_element_type=jnp.float32) + b1_ref[...]
    a1 = jnp.maximum(h1, 0.0)

    # mlp2: (TB, 256) @ (256, 128)   (64-wide hidden zero-padded to 128 lanes)
    h2 = jnp.dot(a1.astype(w2_ref.dtype), w2_ref[...],
                 preferred_element_type=jnp.float32) + b2_ref[...]
    a2 = jnp.maximum(h2, 0.0)                                 # padded lanes stay 0

    # mlp3: (TB, 128) @ (128, 128)   (num_class zero-padded to 128 lanes)
    out = jnp.dot(a2.astype(w3_ref.dtype), w3_ref[...],
                  preferred_element_type=jnp.float32) + b3_ref[...]
    return out, h1


def _kpconv_c_kernel(x_ref, w1_ref, b1_ref, w2_ref, b2_ref, w3_ref, b3_ref,
                     out_ref):
    out, _ = _mlp_core(x_ref, w1_ref, b1_ref, w2_ref, b2_ref, w3_ref, b3_ref)
    out_ref[...] = out.astype(out_ref.dtype)


def _kpconv_c_kernel_adapt(x_ref, w1_ref, b1_ref, w2_ref, b2_ref, w3_ref, b3_ref,
                           out_ref, mid_ref):
    out, h1 = _mlp_core(x_ref, w1_ref, b1_ref, w2_ref, b2_ref, w3_ref, b3_ref)
    out_ref[...] = out.astype(out_ref.dtype)
    mid_ref[...] = h1.astype(mid_ref.dtype)   # pre-ReLU "mid_feature", bf16 writeback


# ---------------------------------------------------------------------------
# Parameter init / preparation
# ---------------------------------------------------------------------------

def init_params(key, num_class=NUM_CLASS):
    """Deterministic init mirroring nn.Linear shapes: weight (out, in), bias (out,)."""
    ks = jax.random.split(key, 6)

    def linear(kw, kb, fan_in, fan_out):
        bound = 1.0 / jnp.sqrt(fan_in)
        w = jax.random.uniform(kw, (fan_out, fan_in), jnp.float32, -bound, bound)
        b = jax.random.uniform(kb, (fan_out,), jnp.float32, -bound, bound)
        return w, b

    w1, b1 = linear(ks[0], ks[1], D_IN, D_H1)
    w2, b2 = linear(ks[2], ks[3], D_H1, D_H2)
    w3, b3 = linear(ks[4], ks[5], D_H2, num_class)
    return (w1, b1, w2, b2, w3, b3)


def prepare_params(params, compute_dtype=jnp.bfloat16):
    """One-time (outside jit) layout prep: transpose to (in, out), cast matmul
    weights to bf16, keep biases f32 as (1, out). The 64-wide hidden and the
    num_class classifier are zero-padded to 128 lanes (lane-dense vregs /
    MXU-friendly contraction depth); padding is exact since padded bias/weight
    entries are 0 and ReLU(0) == 0."""
    w1, b1, w2, b2, w3, b3 = params
    num_class = w3.shape[0]
    nc_pad = _round_up(max(num_class, 1), LANE)
    h2 = w2.shape[0]
    h2_pad = _round_up(h2, LANE)

    w1t = jnp.asarray(w1.T, compute_dtype)                            # (1024, 256)
    b1r = b1[None, :].astype(jnp.float32)                             # (1, 256)

    w2t = jnp.zeros((w2.shape[1], h2_pad), compute_dtype)             # (256, 128)
    w2t = w2t.at[:, :h2].set(w2.T.astype(compute_dtype))
    b2r = jnp.zeros((1, h2_pad), jnp.float32)                         # (1, 128)
    b2r = b2r.at[:, :h2].set(b2.astype(jnp.float32))

    w3t = jnp.zeros((h2_pad, nc_pad), compute_dtype)                  # (128, 128)
    w3t = w3t.at[:h2, :num_class].set(w3.T.astype(compute_dtype))
    b3r = jnp.zeros((1, nc_pad), jnp.float32)                         # (1, 128)
    b3r = b3r.at[:, :num_class].set(b3.astype(jnp.float32))

    prepared = (w1t, b1r, w2t, b2r, w3t, b3r)
    return prepared, num_class


# ---------------------------------------------------------------------------
# Forward
# ---------------------------------------------------------------------------

@functools.partial(jax.jit, static_argnames=("num_class", "adapt"))
def kpconv_c_forward(x, prepared, num_class, adapt=False):
    w1t, b1r, w2t, b2r, w3t, b3r = prepared
    B = x.shape[0]
    d_in, h1 = w1t.shape
    h2p = w2t.shape[1]
    nc_pad = w3t.shape[1]

    tb, bp = _choose_tiles(B)
    if bp != B:
        # Only when B is not already tile-aligned (f32, no dtype cast).
        x = jnp.pad(x, ((0, bp - B), (0, 0)))

    grid = (bp // tb,)

    in_specs = [
        pl.BlockSpec((tb, d_in), lambda i: (i, 0)),    # x, f32, cast in-kernel
        pl.BlockSpec((d_in, h1), lambda i: (0, 0)),    # w1t (bf16)
        pl.BlockSpec((1, h1), lambda i: (0, 0)),       # b1 (f32)
        pl.BlockSpec((h1, h2p), lambda i: (0, 0)),     # w2t (bf16)
        pl.BlockSpec((1, h2p), lambda i: (0, 0)),      # b2 (f32)
        pl.BlockSpec((h2p, nc_pad), lambda i: (0, 0)), # w3t (bf16)
        pl.BlockSpec((1, nc_pad), lambda i: (0, 0)),   # b3 (f32)
    ]

    if adapt:
        out_specs = (
            pl.BlockSpec((tb, nc_pad), lambda i: (i, 0)),
            pl.BlockSpec((tb, h1), lambda i: (i, 0)),
        )
        out_shape = (
            jax.ShapeDtypeStruct((bp, nc_pad), jnp.float32),
            jax.ShapeDtypeStruct((bp, h1), jnp.bfloat16),   # mid_feature, bf16
        )
        kernel = _kpconv_c_kernel_adapt
    else:
        out_specs = pl.BlockSpec((tb, nc_pad), lambda i: (i, 0))
        out_shape = jax.ShapeDtypeStruct((bp, nc_pad), jnp.float32)
        kernel = _kpconv_c_kernel

    result = pl.pallas_call(
        kernel,
        grid_spec=pltpu.PrefetchScalarGridSpec(
            num_scalar_prefetch=0,
            grid=grid,
            in_specs=in_specs,
            out_specs=out_specs,
        ),
        out_shape=out_shape,
        compiler_params=pltpu.CompilerParams(
            dimension_semantics=("parallel",),
            vmem_limit_bytes=32 << 20,   # covers v5e's 16 MiB scoped default; fits v7x
        ),
    )(x, w1t, b1r, w2t, b2r, w3t, b3r)

    # Slices below fuse into the jitted consumer (no extra materialized pass).
    if adapt:
        logits_p, mid_p = result
        # mid_feature intentionally returned in bf16 (adapter-side precision OK).
        return logits_p[:B, :num_class], mid_p[:B, :]
    return result[:B, :num_class]


# ---------------------------------------------------------------------------
# Pure-JAX reference (f32, mirrors the PyTorch module)
# ---------------------------------------------------------------------------

def _reference(x, params, adapt=False):
    w1, b1, w2, b2, w3, b3 = params
    h = x @ w1.T + b1
    mid = h
    h = jnp.maximum(h, 0.0)
    h = jnp.maximum(h @ w2.T + b2, 0.0)
    out = h @ w3.T + b3
    return (out, mid) if adapt else out


if __name__ == "__main__":
    key = jax.random.PRNGKey(0)
    k_param, k_x, k_x2 = jax.random.split(key, 3)

    params = init_params(k_param, NUM_CLASS)
    prepared, num_class = prepare_params(params)

    # Small deterministic input.
    B = 8
    x = jax.random.normal(k_x, (B, D_IN), jnp.float32)

    # adapt=False path (logits only; no mid_feature HBM traffic)
    logits = kpconv_c_forward(x, prepared, num_class, adapt=False)
    logits = jax.block_until_ready(logits)

    # adapt=True path (also returns mid_feature = pre-ReLU mlp1 output)
    logits_a, mid = kpconv_c_forward(x, prepared, num_class, adapt=True)
    jax.block_until_ready((logits_a, mid))

    # Sanity check against f32 reference (bf16 matmul inputs -> loose tol).
    ref_logits, ref_mid = _reference(x, params, adapt=True)
    assert logits.shape == (B, num_class)
    assert logits_a.shape == (B, num_class) and mid.shape == (B, D_H1)
    assert jnp.allclose(logits, ref_logits, atol=2e-2, rtol=2e-2)
    assert jnp.allclose(logits_a, ref_logits, atol=2e-2, rtol=2e-2)
    assert jnp.allclose(mid.astype(jnp.float32), ref_mid, atol=2e-2, rtol=2e-2)

    # Exercise a batch that is not a multiple of the 16-row alignment.
    B2 = 12
    x2 = jax.random.normal(k_x2, (B2, D_IN), jnp.float32)
    logits2 = jax.block_until_ready(
        kpconv_c_forward(x2, prepared, num_class, adapt=False))
    ref2 = _reference(x2, params, adapt=False)
    assert logits2.shape == (B2, num_class)
    assert jnp.allclose(logits2, ref2, atol=2e-2, rtol=2e-2)

    print("KERNEL_OK")
</pallas_src>

<mosaic_0001>
module attributes {stable_mosaic.version = 11 : i64} {
  func.func @_kpconv_c_kernel(%arg0: i32, %arg1: memref<16x1024xf32, #tpu.memory_space<vmem>>, %arg2: memref<1024x256xbf16, #tpu.memory_space<vmem>>, %arg3: memref<1x256xf32, #tpu.memory_space<vmem>>, %arg4: memref<256x128xbf16, #tpu.memory_space<vmem>>, %arg5: memref<1x128xf32, #tpu.memory_space<vmem>>, %arg6: memref<128x128xbf16, #tpu.memory_space<vmem>>, %arg7: memref<1x128xf32, #tpu.memory_space<vmem>>, %arg8: memref<16x128xf32, #tpu.memory_space<vmem>>) attributes {dimension_semantics = [#tpu.dimension_semantics<parallel>], iteration_bounds = array<i64: 1>, scalar_prefetch = 0 : i64, scratch_operands = 0 : i64, tpu.core_type = #tpu.core_type<tc>, window_params = [{transform_indices = @transform_0, window_bounds = array<i64: 16, 1024>}, {pipeline_mode = #tpu.pipeline_mode<synchronous>, transform_indices = @transform_1, window_bounds = array<i64: 1024, 256>}, {pipeline_mode = #tpu.pipeline_mode<synchronous>, transform_indices = @transform_2, window_bounds = array<i64: 1, 256>}, {pipeline_mode = #tpu.pipeline_mode<synchronous>, transform_indices = @transform_3, window_bounds = array<i64: 256, 128>}, {pipeline_mode = #tpu.pipeline_mode<synchronous>, transform_indices = @transform_4, window_bounds = array<i64: 1, 128>}, {pipeline_mode = #tpu.pipeline_mode<synchronous>, transform_indices = @transform_5, window_bounds = array<i64: 128, 128>}, {pipeline_mode = #tpu.pipeline_mode<synchronous>, transform_indices = @transform_6, window_bounds = array<i64: 1, 128>}, {transform_indices = @transform_7, window_bounds = array<i64: 16, 128>}]} {
    %c0 = arith.constant 0 : index
    %c0_0 = arith.constant 0 : index
    %0 = vector.load %arg1[%c0, %c0_0] : memref<16x1024xf32, #tpu.memory_space<vmem>>, vector<16x1024xf32>
    %1 = arith.truncf %0 : vector<16x1024xf32> to vector<16x1024xbf16>
    %c0_1 = arith.constant 0 : index
    %c0_2 = arith.constant 0 : index
    %2 = vector.load %arg2[%c0_1, %c0_2] : memref<1024x256xbf16, #tpu.memory_space<vmem>>, vector<1024x256xbf16>
    %cst = arith.constant dense<0.000000e+00> : vector<16x256xf32>
    %3 = tpu.matmul %1, %2, %cst {dimension_numbers = #tpu.dot_dimension_numbers<[1], [0], [0], [1], [0, 0, 1, 1], [], []>} : vector<16x1024xbf16>, vector<1024x256xbf16>, vector<16x256xf32> -> vector<16x256xf32>
    %c0_3 = arith.constant 0 : index
    %c0_4 = arith.constant 0 : index
    %4 = vector.load %arg3[%c0_3, %c0_4] : memref<1x256xf32, #tpu.memory_space<vmem>>, vector<1x256xf32>
    %5 = vector.broadcast %4 : vector<1x256xf32> to vector<16x256xf32>
    %6 = arith.addf %3, %5 : vector<16x256xf32>
    %cst_5 = arith.constant 0.000000e+00 : f32
    %7 = vector.broadcast %cst_5 : f32 to vector<16x256xf32>
    %8 = arith.maximumf %6, %7 : vector<16x256xf32>
    %9 = arith.truncf %8 : vector<16x256xf32> to vector<16x256xbf16>
    %c0_6 = arith.constant 0 : index
    %c0_7 = arith.constant 0 : index
    %10 = vector.load %arg4[%c0_6, %c0_7] : memref<256x128xbf16, #tpu.memory_space<vmem>>, vector<256x128xbf16>
    %cst_8 = arith.constant dense<0.000000e+00> : vector<16x128xf32>
    %11 = tpu.matmul %9, %10, %cst_8 {dimension_numbers = #tpu.dot_dimension_numbers<[1], [0], [0], [1], [0, 0, 1, 1], [], []>} : vector<16x256xbf16>, vector<256x128xbf16>, vector<16x128xf32> -> vector<16x128xf32>
    %c0_9 = arith.constant 0 : index
    %c0_10 = arith.constant 0 : index
    %12 = vector.load %arg5[%c0_9, %c0_10] : memref<1x128xf32, #tpu.memory_space<vmem>>, vector<1x128xf32>
    %13 = vector.broadcast %12 : vector<1x128xf32> to vector<16x128xf32>
    %14 = arith.addf %11, %13 : vector<16x128xf32>
    %cst_11 = arith.constant 0.000000e+00 : f32
    %15 = vector.broadcast %cst_11 : f32 to vector<16x128xf32>
    %16 = arith.maximumf %14, %15 : vector<16x128xf32>
    %17 = arith.truncf %16 : vector<16x128xf32> to vector<16x128xbf16>
    %c0_12 = arith.constant 0 : index
    %c0_13 = arith.constant 0 : index
    %18 = vector.load %arg6[%c0_12, %c0_13] : memref<128x128xbf16, #tpu.memory_space<vmem>>, vector<128x128xbf16>
    %cst_14 = arith.constant dense<0.000000e+00> : vector<16x128xf32>
    %19 = tpu.matmul %17, %18, %cst_14 {dimension_numbers = #tpu.dot_dimension_numbers<[1], [0], [0], [1], [0, 0, 1, 1], [], []>} : vector<16x128xbf16>, vector<128x128xbf16>, vector<16x128xf32> -> vector<16x128xf32>
    %c0_15 = arith.constant 0 : index
    %c0_16 = arith.constant 0 : index
    %20 = vector.load %arg7[%c0_15, %c0_16] : memref<1x128xf32, #tpu.memory_space<vmem>>, vector<1x128xf32>
    %21 = vector.broadcast %20 : vector<1x128xf32> to vector<16x128xf32>
    %22 = arith.addf %19, %21 : vector<16x128xf32>
    %c0_17 = arith.constant 0 : index
    %c0_18 = arith.constant 0 : index
    %23 = vector.load %arg8[%c0_17, %c0_18] : memref<16x128xf32, #tpu.memory_space<vmem>>, vector<16x128xf32>
    tpu.vector_store %arg8[%c0_17, %c0_18], %22 {strides = array<i32>} : memref<16x128xf32, #tpu.memory_space<vmem>>, vector<16x128xf32>,
    return
  }
  func.func @transform_0(%arg0: i32) -> (i32, i32) {
    %c0_i32 = arith.constant 0 : i32
    %c0_i32_0 = arith.constant 0 : i32
    return %arg0, %c0_i32 : i32, i32
  }
  func.func @transform_1(%arg0: i32) -> (i32, i32) {
    %c0_i32 = arith.constant 0 : i32
    %c0_i32_0 = arith.constant 0 : i32
    %c0_i32_1 = arith.constant 0 : i32
    return %c0_i32, %c0_i32_0 : i32, i32
  }
  func.func @transform_2(%arg0: i32) -> (i32, i32) {
    %c0_i32 = arith.constant 0 : i32
    %c0_i32_0 = arith.constant 0 : i32
    %c0_i32_1 = arith.constant 0 : i32
    return %c0_i32, %c0_i32_0 : i32, i32
  }
  func.func @transform_3(%arg0: i32) -> (i32, i32) {
    %c0_i32 = arith.constant 0 : i32
    %c0_i32_0 = arith.constant 0 : i32
    %c0_i32_1 = arith.constant 0 : i32
    return %c0_i32, %c0_i32_0 : i32, i32
  }
  func.func @transform_4(%arg0: i32) -> (i32, i32) {
    %c0_i32 = arith.constant 0 : i32
    %c0_i32_0 = arith.constant 0 : i32
    %c0_i32_1 = arith.constant 0 : i32
    return %c0_i32, %c0_i32_0 : i32, i32
  }
  func.func @transform_5(%arg0: i32) -> (i32, i32) {
    %c0_i32 = arith.constant 0 : i32
    %c0_i32_0 = arith.constant 0 : i32
    %c0_i32_1 = arith.constant 0 : i32
    return %c0_i32, %c0_i32_0 : i32, i32
  }
  func.func @transform_6(%arg0: i32) -> (i32, i32) {
    %c0_i32 = arith.constant 0 : i32
    %c0_i32_0 = arith.constant 0 : i32
    %c0_i32_1 = arith.constant 0 : i32
    return %c0_i32, %c0_i32_0 : i32, i32
  }
  func.func @transform_7(%arg0: i32) -> (i32, i32) {
    %c0_i32 = arith.constant 0 : i32
    %c0_i32_0 = arith.constant 0 : i32
    return %arg0, %c0_i32 : i32, i32
  }
}

</mosaic_0001>

<llo_original>
// kernel: kpconv_c_forward.1
$region0: #{kpconv_c_forward.1}
  #allocation0 [shape = 'u32[]', space=smem, size = 0x4, offset = 0x4, fixed_abs, tag = 'smem constant byte address 0x4 - core index']
  #allocation1 [shape = 'u32[72,128]{1,0:T(1,128)}', space=vmem, size = 0x9000, scoped, tag = 'internal scratch']
  %s0 = inlined_call_operand.vmem [shape: f32[16,1024], index: 0, kind: input, shape index: {}]
  %s1 = inlined_call_operand.hbm [shape: bf16[1024,256], index: 1, kind: input, shape index: {}]
  %s2 = inlined_call_operand.vmem [shape: f32[1,256], index: 2, kind: input, shape index: {}]
  %s3 = inlined_call_operand.vmem [shape: bf16[256,128], index: 3, kind: input, shape index: {}]
  %s4 = inlined_call_operand.vmem [shape: f32[1,128], index: 4, kind: input, shape index: {}]
  %s5 = inlined_call_operand.vmem [shape: bf16[128,128], index: 5, kind: input, shape index: {}]
  %s6 = inlined_call_operand.vmem [shape: f32[1,128], index: 6, kind: input, shape index: {}]
  %s7 = inlined_call_operand.vmem [shape: f32[16,128], index: 7, kind: output, shape index: {}]
  %s8 = sld [smem:[#allocation0]]
  $region42: #{kpconv_c_forward.1} parent=0
    _
  %s10 = ssub.s32 1, %s8
  %s11 = scalar_select 0, %s10, %s8
  $region1: #{kpconv_c_forward.1} parent=0
    #allocation2 [shape = 'u8[524288]{0}', space=vmem, size = 0x80000, scoped, tag = 'input window, operand 1, single buffered']
    #allocation3 [shape = 's32[1]{0}', space=sflag, size = 0x4, scoped, tag = 'scoped memory for kpconv_c_forward.1']
    %12 = vsyncpa [#allocation3], 0
    // Predicated region
    $region2: #{kpconv_c_forward.1} parent=1 // pred_check
      _
    $region3: #{kpconv_c_forward.1} parent=1 // pred_check_branch
      %14 = sbr.rel (0) target = $region5
    $region4: #{kpconv_c_forward.1} parent=1 // pred_region
      _
    $region5: #{kpconv_c_forward.1} parent=1 // pred_fallthru
      _
    // Predicated region
    $region6: #{kpconv_c_forward.1} parent=1 // pred_check
      _
    $region7: #{kpconv_c_forward.1} parent=1 // pred_check_branch
      %16 = sbr.rel (0) target = $region9
    $region8: #{kpconv_c_forward.1} parent=1 // pred_region
      %18 = vsyncadd [#allocation3], 0
      %s19 = sshll.u32 %s1, 4
      %s20 = int_to_ptr.hbm [resolvable:$true] %s19
      %s21 = sshll.u32 [#allocation2], 4
      %s22 = int_to_ptr.vmem [resolvable:$true] %s21
      %27 = dma.hbm_to_vmem [thread:$0]  %s20, 16384, %s22, [#allocation3], 128, 128, 8
    $region9: #{kpconv_c_forward.1} parent=1 // pred_fallthru
      _
    // Predicated region
    $region10: #{kpconv_c_forward.1} parent=1 // pred_check
      _
    $region11: #{kpconv_c_forward.1} parent=1 // pred_check_branch
      %29 = sbr.rel (0) target = $region13
    $region12: #{kpconv_c_forward.1} parent=1 // pred_region
      _
    $region13: #{kpconv_c_forward.1} parent=1 // pred_fallthru
      _
    // Predicated region
    $region14: #{kpconv_c_forward.1} parent=1 // pred_check
      _
    $region15: #{kpconv_c_forward.1} parent=1 // pred_check_branch
      %31 = sbr.rel (0) target = $region17
    $region16: #{kpconv_c_forward.1} parent=1 // pred_region
      _
    $region17: #{kpconv_c_forward.1} parent=1 // pred_fallthru
      _
    // Predicated region
    $region18: #{kpconv_c_forward.1} parent=1 // pred_check
      _
    $region19: #{kpconv_c_forward.1} parent=1 // pred_check_branch
      %33 = sbr.rel (0) target = $region21
    $region20: #{kpconv_c_forward.1} parent=1 // pred_region
      _
    $region21: #{kpconv_c_forward.1} parent=1 // pred_fallthru
      _
    // Predicated region
    $region22: #{kpconv_c_forward.1} parent=1 // pred_check
      _
    $region23: #{kpconv_c_forward.1} parent=1 // pred_check_branch
      %35 = sbr.rel (0) target = $region25
    $region24: #{kpconv_c_forward.1} parent=1 // pred_region
      _
    $region25: #{kpconv_c_forward.1} parent=1 // pred_fallthru
      _
    // Predicated region
    $region26: #{kpconv_c_forward.1} parent=1 // pred_check
      _
    $region27: #{kpconv_c_forward.1} parent=1 // pred_check_branch
      %37 = sbr.rel (0) target = $region29
    $region28: #{kpconv_c_forward.1} parent=1 // pred_region
      _
    $region29: #{kpconv_c_forward.1} parent=1 // pred_fallthru
      _
    // Predicated region
    $region30: #{kpconv_c_forward.1} parent=1 // pred_check
      _
    $region31: #{kpconv_c_forward.1} parent=1 // pred_check_branch
      %39 = sbr.rel (0) target = $region33
    $region32: #{kpconv_c_forward.1} parent=1 // pred_region
      %41 = dma.done [#allocation3], 16384
    $region33: #{kpconv_c_forward.1} parent=1 // pred_fallthru
      _
    %v42 = vld [vmem:[%s0] sm:$0xff]
    %v43 = vld [vmem:[%s0 + $0x8] sm:$0xff]
    %v44 = vld [vmem:[%s0 + $0x10] sm:$0xff]
    %v45 = vld [vmem:[%s0 + $0x18] sm:$0xff]
    %v46 = vld [vmem:[%s0 + $0x20] sm:$0xff]
    %v47 = vld [vmem:[%s0 + $0x28] sm:$0xff]
    %v48 = vld [vmem:[%s0 + $0x30] sm:$0xff]
    %v49 = vld [vmem:[%s0 + $0x38] sm:$0xff]
    %v50 = vld [vmem:[%s0 + $0x40] sm:$0xff]
    %v51 = vld [vmem:[%s0 + $0x48] sm:$0xff]
    %v52 = vld [vmem:[%s0 + $0x50] sm:$0xff]
    %v53 = vld [vmem:[%s0 + $0x58] sm:$0xff]
    %v54 = vld [vmem:[%s0 + $0x60] sm:$0xff]
    %v55 = vld [vmem:[%s0 + $0x68] sm:$0xff]
    %v56 = vld [vmem:[%s0 + $0x70] sm:$0xff]
    %v57 = vld [vmem:[%s0 + $0x78] sm:$0xff]
    %v58 = vpack.c.bf16 %v50, %v42
    %v59 = vpack.c.bf16 %v51, %v43
    %v60 = vpack.c.bf16 %v52, %v44
    %v61 = vpack.c.bf16 %v53, %v45
    %v62 = vpack.c.bf16 %v54, %v46
    %v63 = vpack.c.bf16 %v55, %v47
    %v64 = vpack.c.bf16 %v56, %v48
    %v65 = vpack.c.bf16 %v57, %v49
    %v66 = vld [vmem:[#allocation2] sm:$0xff]
    %v67 = vld [vmem:[#allocation2 + $0x8] sm:$0xff]
    %v68 = vld [vmem:[#allocation2 + $0x10] sm:$0xff]
    %v69 = vld [vmem:[#allocation2 + $0x18] sm:$0xff]
    %v70 = vld [vmem:[#allocation2 + $0x20] sm:$0xff]
    %v71 = vld [vmem:[#allocation2 + $0x28] sm:$0xff]
    %v72 = vld [vmem:[#allocation2 + $0x30] sm:$0xff]
    %v73 = vld [vmem:[#allocation2 + $0x38] sm:$0xff]
    %v74 = vld [vmem:[#allocation2 + $0x40] sm:$0xff]
    %v75 = vld [vmem:[#allocation2 + $0x48] sm:$0xff]
    %v76 = vld [vmem:[#allocation2 + $0x50] sm:$0xff]
    %v77 = vld [vmem:[#allocation2 + $0x58] sm:$0xff]
    %v78 = vld [vmem:[#allocation2 + $0x60] sm:$0xff]
    %v79 = vld [vmem:[#allocation2 + $0x68] sm:$0xff]
    %v80 = vld [vmem:[#allocation2 + $0x70] sm:$0xff]
    %v81 = vld [vmem:[#allocation2 + $0x78] sm:$0xff]
    %v82 = vld [vmem:[#allocation2 + $0x80] sm:$0xff]
    %v83 = vld [vmem:[#allocation2 + $0x88] sm:$0xff]
    %v84 = vld [vmem:[#allocation2 + $0x90] sm:$0xff]
    %v85 = vld [vmem:[#allocation2 + $0x98] sm:$0xff]
    %v86 = vld [vmem:[#allocation2 + $0xa0] sm:$0xff]
    %v87 = vld [vmem:[#allocation2 + $0xa8] sm:$0xff]
    %v88 = vld [vmem:[#allocation2 + $0xb0] sm:$0xff]
    %v89 = vld [vmem:[#allocation2 + $0xb8] sm:$0xff]
    %v90 = vld [vmem:[#allocation2 + $0xc0] sm:$0xff]
    %v91 = vld [vmem:[#allocation2 + $0xc8] sm:$0xff]
    %v92 = vld [vmem:[#allocation2 + $0xd0] sm:$0xff]
    %v93 = vld [vmem:[#allocation2 + $0xd8] sm:$0xff]
    %v94 = vld [vmem:[#allocation2 + $0xe0] sm:$0xff]
    %v95 = vld [vmem:[#allocation2 + $0xe8] sm:$0xff]
    %v96 = vld [vmem:[#allocation2 + $0xf0] sm:$0xff]
    %v97 = vld [vmem:[#allocation2 + $0xf8] sm:$0xff]
    %v98 = vld [vmem:[#allocation2 + $0x100] sm:$0xff]
    %v99 = vld [vmem:[#allocation2 + $0x108] sm:$0xff]
    %v100 = vld [vmem:[#allocation2 + $0x110] sm:$0xff]
    %v101 = vld [vmem:[#allocation2 + $0x118] sm:$0xff]
    %v102 = vld [vmem:[#allocation2 + $0x120] sm:$0xff]
    %v103 = vld [vmem:[#allocation2 + $0x128] sm:$0xff]
    %v104 = vld [vmem:[#allocation2 + $0x130] sm:$0xff]
    %v105 = vld [vmem:[#allocation2 + $0x138] sm:$0xff]
    %v106 = vld [vmem:[#allocation2 + $0x140] sm:$0xff]
    %v107 = vld [vmem:[#allocation2 + $0x148] sm:$0xff]
    %v108 = vld [vmem:[#allocation2 + $0x150] sm:$0xff]
    %v109 = vld [vmem:[#allocation2 + $0x158] sm:$0xff]
    %v110 = vld [vmem:[#allocation2 + $0x160] sm:$0xff]
    %v111 = vld [vmem:[#allocation2 + $0x168] sm:$0xff]
    %v112 = vld [vmem:[#allocation2 + $0x170] sm:$0xff]
    %v113 = vld [vmem:[#allocation2 + $0x178] sm:$0xff]
    %v114 = vld [vmem:[#allocation2 + $0x180] sm:$0xff]
    %v115 = vld [vmem:[#allocation2 + $0x188] sm:$0xff]
    %v116 = vld [vmem:[#allocation2 + $0x190] sm:$0xff]
    %v117 = vld [vmem:[#allocation2 + $0x198] sm:$0xff]
    %v118 = vld [vmem:[#allocation2 + $0x1a0] sm:$0xff]
    %v119 = vld [vmem:[#allocation2 + $0x1a8] sm:$0xff]
    %v120 = vld [vmem:[#allocation2 + $0x1b0] sm:$0xff]
    %v121 = vld [vmem:[#allocation2 + $0x1b8] sm:$0xff]
    %v122 = vld [vmem:[#allocation2 + $0x1c0] sm:$0xff]
    %v123 = vld [vmem:[#allocation2 + $0x1c8] sm:$0xff]
    %v124 = vld [vmem:[#allocation2 + $0x1d0] sm:$0xff]
    %v125 = vld [vmem:[#allocation2 + $0x1d8] sm:$0xff]
    %v126 = vld [vmem:[#allocation2 + $0x1e0] sm:$0xff]
    %v127 = vld [vmem:[#allocation2 + $0x1e8] sm:$0xff]
    %v128 = vld [vmem:[#allocation2 + $0x1f0] sm:$0xff]
    %v129 = vld [vmem:[#allocation2 + $0x1f8] sm:$0xff]
    %v130 = vld [vmem:[#allocation2 + $0x200] sm:$0xff]
    %v131 = vld [vmem:[#allocation2 + $0x208] sm:$0xff]
    %v132 = vld [vmem:[#allocation2 + $0x210] sm:$0xff]
    %v133 = vld [vmem:[#allocation2 + $0x218] sm:$0xff]
    %v134 = vld [vmem:[#allocation2 + $0x220] sm:$0xff]
    %v135 = vld [vmem:[#allocation2 + $0x228] sm:$0xff]
    %v136 = vld [vmem:[#allocation2 + $0x230] sm:$0xff]
    %v137 = vld [vmem:[#allocation2 + $0x238] sm:$0xff]
    %v138 = vld [vmem:[#allocation2 + $0x240] sm:$0xff]
    %v139 = vld [vmem:[#allocation2 + $0x248] sm:$0xff]
    %v140 = vld [vmem:[#allocation2 + $0x250] sm:$0xff]
    %v141 = vld [vmem:[#allocation2 + $0x258] sm:$0xff]
    %v142 = vld [vmem:[#allocation2 + $0x260] sm:$0xff]
    %v143 = vld [vmem:[#allocation2 + $0x268] sm:$0xff]
    %v144 = vld [vmem:[#allocation2 + $0x270] sm:$0xff]
    %v145 = vld [vmem:[#allocation2 + $0x278] sm:$0xff]
    %v146 = vld [vmem:[#allocation2 + $0x280] sm:$0xff]
    %v147 = vld [vmem:[#allocation2 + $0x288] sm:$0xff]
    %v148 = vld [vmem:[#allocation2 + $0x290] sm:$0xff]
    %v149 = vld [vmem:[#allocation2 + $0x298] sm:$0xff]
    %v150 = vld [vmem:[#allocation2 + $0x2a0] sm:$0xff]
    %v151 = vld [vmem:[#allocation2 + $0x2a8] sm:$0xff]
    %v152 = vld [vmem:[#allocation2 + $0x2b0] sm:$0xff]
    %v153 = vld [vmem:[#allocation2 + $0x2b8] sm:$0xff]
    %v154 = vld [vmem:[#allocation2 + $0x2c0] sm:$0xff]
    %v155 = vld [vmem:[#allocation2 + $0x2c8] sm:$0xff]
    %v156 = vld [vmem:[#allocation2 + $0x2d0] sm:$0xff]
    %v157 = vld [vmem:[#allocation2 + $0x2d8] sm:$0xff]
    %v158 = vld [vmem:[#allocation2 + $0x2e0] sm:$0xff]
    %v159 = vld [vmem:[#allocation2 + $0x2e8] sm:$0xff]
    %v160 = vld [vmem:[#allocation2 + $0x2f0] sm:$0xff]
    %v161 = vld [vmem:[#allocation2 + $0x2f8] sm:$0xff]
    %v162 = vld [vmem:[#allocation2 + $0x300] sm:$0xff]
    %v163 = vld [vmem:[#allocation2 + $0x308] sm:$0xff]
    %v164 = vld [vmem:[#allocation2 + $0x310] sm:$0xff]
    %v165 = vld [vmem:[#allocation2 + $0x318] sm:$0xff]
    %v166 = vld [vmem:[#allocation2 + $0x320] sm:$0xff]
    %v167 = vld [vmem:[#allocation2 + $0x328] sm:$0xff]
    %v168 = vld [vmem:[#allocation2 + $0x330] sm:$0xff]
    %v169 = vld [vmem:[#allocation2 + $0x338] sm:$0xff]
    %v170 = vld [vmem:[#allocation2 + $0x340] sm:$0xff]
    %v171 = vld [vmem:[#allocation2 + $0x348] sm:$0xff]
    %v172 = vld [vmem:[#allocation2 + $0x350] sm:$0xff]
    %v173 = vld [vmem:[#allocation2 + $0x358] sm:$0xff]
    %v174 = vld [vmem:[#allocation2 + $0x360] sm:$0xff]
    %v175 = vld [vmem:[#allocation2 + $0x368] sm:$0xff]
    %v176 = vld [vmem:[#allocation2 + $0x370] sm:$0xff]
    %v177 = vld [vmem:[#allocation2 + $0x378] sm:$0xff]
    %v178 = vld [vmem:[#allocation2 + $0x380] sm:$0xff]
    %v179 = vld [vmem:[#allocation2 + $0x388] sm:$0xff]
    %v180 = vld [vmem:[#allocation2 + $0x390] sm:$0xff]
    %v181 = vld [vmem:[#allocation2 + $0x398] sm:$0xff]
    %v182 = vld [vmem:[#allocation2 + $0x3a0] sm:$0xff]
    %v183 = vld [vmem:[#allocation2 + $0x3a8] sm:$0xff]
    %v184 = vld [vmem:[#allocation2 + $0x3b0] sm:$0xff]
    %v185 = vld [vmem:[#allocation2 + $0x3b8] sm:$0xff]
    %v186 = vld [vmem:[#allocation2 + $0x3c0] sm:$0xff]
    %v187 = vld [vmem:[#allocation2 + $0x3c8] sm:$0xff]
    %v188 = vld [vmem:[#allocation2 + $0x3d0] sm:$0xff]
    %v189 = vld [vmem:[#allocation2 + $0x3d8] sm:$0xff]
    %v190 = vld [vmem:[#allocation2 + $0x3e0] sm:$0xff]
    %v191 = vld [vmem:[#allocation2 + $0x3e8] sm:$0xff]
    %v192 = vld [vmem:[#allocation2 + $0x3f0] sm:$0xff]
    %v193 = vld [vmem:[#allocation2 + $0x3f8] sm:$0xff]
    %v194 = vld [vmem:[%s2] sm:$0x3]
    %v196 = vperm.slane %v194, 0
    %v197 = vperm.slane %v194, 1
    %v328 = vunpack.c.l.b16 %v66
    %v329 = vunpack.c.h.b16 %v66
    %v330 = vunpack.c.l.b16 %v67
    %v331 = vunpack.c.h.b16 %v67
    %v332 = vunpack.c.l.b16 %v68
    %v333 = vunpack.c.h.b16 %v68
    %v334 = vunpack.c.l.b16 %v69
    %v335 = vunpack.c.h.b16 %v69
    %v336 = vunpack.c.l.b16 %v70
    %v337 = vunpack.c.h.b16 %v70
    %v338 = vunpack.c.l.b16 %v71
    %v339 = vunpack.c.h.b16 %v71
    %v340 = vunpack.c.l.b16 %v72
    %v341 = vunpack.c.h.b16 %v72
    %v342 = vunpack.c.l.b16 %v73
    %v343 = vunpack.c.h.b16 %v73
    %v344 = vunpack.c.l.b16 %v74
    %v345 = vunpack.c.h.b16 %v74
    %v346 = vunpack.c.l.b16 %v75
    %v347 = vunpack.c.h.b16 %v75
    %v348 = vunpack.c.l.b16 %v76
    %v349 = vunpack.c.h.b16 %v76
    %v350 = vunpack.c.l.b16 %v77
    %v351 = vunpack.c.h.b16 %v77
    %v352 = vunpack.c.l.b16 %v78
    %v353 = vunpack.c.h.b16 %v78
    %v354 = vunpack.c.l.b16 %v79
    %v355 = vunpack.c.h.b16 %v79
    %v356 = vunpack.c.l.b16 %v80
    %v357 = vunpack.c.h.b16 %v80
    %v358 = vunpack.c.l.b16 %v81
    %v359 = vunpack.c.h.b16 %v81
    %v360 = vunpack.c.l.b16 %v82
    %v361 = vunpack.c.h.b16 %v82
    %v362 = vunpack.c.l.b16 %v83
    %v363 = vunpack.c.h.b16 %v83
    %v364 = vunpack.c.l.b16 %v84
    %v365 = vunpack.c.h.b16 %v84
    %v366 = vunpack.c.l.b16 %v85
    %v367 = vunpack.c.h.b16 %v85
    %v368 = vunpack.c.l.b16 %v86
    %v369 = vunpack.c.h.b16 %v86
    %v370 = vunpack.c.l.b16 %v87
    %v371 = vunpack.c.h.b16 %v87
    %v372 = vunpack.c.l.b16 %v88
    %v373 = vunpack.c.h.b16 %v88
    %v374 = vunpack.c.l.b16 %v89
    %v375 = vunpack.c.h.b16 %v89
    %v376 = vunpack.c.l.b16 %v90
    %v377 = vunpack.c.h.b16 %v90
    %v378 = vunpack.c.l.b16 %v91
    %v379 = vunpack.c.h.b16 %v91
    %v380 = vunpack.c.l.b16 %v92
    %v381 = vunpack.c.h.b16 %v92
    %v382 = vunpack.c.l.b16 %v93
    %v383 = vunpack.c.h.b16 %v93
    %v384 = vunpack.c.l.b16 %v94
    %v385 = vunpack.c.h.b16 %v94
    %v386 = vunpack.c.l.b16 %v95
    %v387 = vunpack.c.h.b16 %v95
    %v388 = vunpack.c.l.b16 %v96
    %v389 = vunpack.c.h.b16 %v96
    %v390 = vunpack.c.l.b16 %v97
    %v391 = vunpack.c.h.b16 %v97
    %v392 = vunpack.c.l.b16 %v98
    %v393 = vunpack.c.h.b16 %v98
    %v394 = vunpack.c.l.b16 %v99
    %v395 = vunpack.c.h.b16 %v99
    %v396 = vunpack.c.l.b16 %v100
    %v397 = vunpack.c.h.b16 %v100
    %v398 = vunpack.c.l.b16 %v101
    %v399 = vunpack.c.h.b16 %v101
    %v400 = vunpack.c.l.b16 %v102
    %v401 = vunpack.c.h.b16 %v102
    %v402 = vunpack.c.l.b16 %v103
    %v403 = vunpack.c.h.b16 %v103
    %v404 = vunpack.c.l.b16 %v104
    %v405 = vunpack.c.h.b16 %v104
    %v406 = vunpack.c.l.b16 %v105
    %v407 = vunpack.c.h.b16 %v105
    %v408 = vunpack.c.l.b16 %v106
    %v409 = vunpack.c.h.b16 %v106
    %v410 = vunpack.c.l.b16 %v107
    %v411 = vunpack.c.h.b16 %v107
    %v412 = vunpack.c.l.b16 %v108
    %v413 = vunpack.c.h.b16 %v108
    %v414 = vunpack.c.l.b16 %v109
    %v415 = vunpack.c.h.b16 %v109
    %v416 = vunpack.c.l.b16 %v110
    %v417 = vunpack.c.h.b16 %v110
    %v418 = vunpack.c.l.b16 %v111
    %v419 = vunpack.c.h.b16 %v111
    %v420 = vunpack.c.l.b16 %v112
    %v421 = vunpack.c.h.b16 %v112
    %v422 = vunpack.c.l.b16 %v113
    %v423 = vunpack.c.h.b16 %v113
    %v424 = vunpack.c.l.b16 %v114
    %v425 = vunpack.c.h.b16 %v114
    %v426 = vunpack.c.l.b16 %v115
    %v427 = vunpack.c.h.b16 %v115
    %v428 = vunpack.c.l.b16 %v116
    %v429 = vunpack.c.h.b16 %v116
    %v430 = vunpack.c.l.b16 %v117
    %v431 = vunpack.c.h.b16 %v117
    %v432 = vunpack.c.l.b16 %v118
    %v433 = vunpack.c.h.b16 %v118
    %v434 = vunpack.c.l.b16 %v119
    %v435 = vunpack.c.h.b16 %v119
    %v436 = vunpack.c.l.b16 %v120
    %v437 = vunpack.c.h.b16 %v120
    %v438 = vunpack.c.l.b16 %v121
    %v439 = vunpack.c.h.b16 %v121
    %v440 = vunpack.c.l.b16 %v122
    %v441 = vunpack.c.h.b16 %v122
    %v442 = vunpack.c.l.b16 %v123
    %v443 = vunpack.c.h.b16 %v123
    %v444 = vunpack.c.l.b16 %v124
    %v445 = vunpack.c.h.b16 %v124
    %v446 = vunpack.c.l.b16 %v125
    %v447 = vunpack.c.h.b16 %v125
    %v448 = vunpack.c.l.b16 %v126
    %v449 = vunpack.c.h.b16 %v126
    %v450 = vunpack.c.l.b16 %v127
    %v451 = vunpack.c.h.b16 %v127
    %v452 = vunpack.c.l.b16 %v128
    %v453 = vunpack.c.h.b16 %v128
    %v454 = vunpack.c.l.b16 %v129
    %v455 = vunpack.c.h.b16 %v129
    %v456 = vunpack.c.l.b16 %v130
    %v457 = vunpack.c.h.b16 %v130
    %v458 = vunpack.c.l.b16 %v131
    %v459 = vunpack.c.h.b16 %v131
    %v460 = vunpack.c.l.b16 %v132
    %v461 = vunpack.c.h.b16 %v132
    %v462 = vunpack.c.l.b16 %v133
    %v463 = vunpack.c.h.b16 %v133
    %v464 = vunpack.c.l.b16 %v134
    %v465 = vunpack.c.h.b16 %v134
    %v466 = vunpack.c.l.b16 %v135
    %v467 = vunpack.c.h.b16 %v135
    %v468 = vunpack.c.l.b16 %v136
    %v469 = vunpack.c.h.b16 %v136
    %v470 = vunpack.c.l.b16 %v137
    %v471 = vunpack.c.h.b16 %v137
    %v472 = vunpack.c.l.b16 %v138
    %v473 = vunpack.c.h.b16 %v138
    %v474 = vunpack.c.l.b16 %v139
    %v475 = vunpack.c.h.b16 %v139
    %v476 = vunpack.c.l.b16 %v140
    %v477 = vunpack.c.h.b16 %v140
    %v478 = vunpack.c.l.b16 %v141
    %v479 = vunpack.c.h.b16 %v141
    %v480 = vunpack.c.l.b16 %v142
    %v481 = vunpack.c.h.b16 %v142
    %v482 = vunpack.c.l.b16 %v143
    %v483 = vunpack.c.h.b16 %v143
    %v484 = vunpack.c.l.b16 %v144
    %v485 = vunpack.c.h.b16 %v144
    %v486 = vunpack.c.l.b16 %v145
    %v487 = vunpack.c.h.b16 %v145
    %v488 = vunpack.c.l.b16 %v146
    %v489 = vunpack.c.h.b16 %v146
    %v490 = vunpack.c.l.b16 %v147
    %v491 = vunpack.c.h.b16 %v147
    %v492 = vunpack.c.l.b16 %v148
    %v493 = vunpack.c.h.b16 %v148
    %v494 = vunpack.c.l.b16 %v149
    %v495 = vunpack.c.h.b16 %v149
    %v496 = vunpack.c.l.b16 %v150
    %v497 = vunpack.c.h.b16 %v150
    %v498 = vunpack.c.l.b16 %v151
    %v499 = vunpack.c.h.b16 %v151
    %v500 = vunpack.c.l.b16 %v152
    %v501 = vunpack.c.h.b16 %v152
    %v502 = vunpack.c.l.b16 %v153
    %v503 = vunpack.c.h.b16 %v153
    %v504 = vunpack.c.l.b16 %v154
    %v505 = vunpack.c.h.b16 %v154
    %v506 = vunpack.c.l.b16 %v155
    %v507 = vunpack.c.h.b16 %v155
    %v508 = vunpack.c.l.b16 %v156
    %v509 = vunpack.c.h.b16 %v156
    %v510 = vunpack.c.l.b16 %v157
    %v511 = vunpack.c.h.b16 %v157
    %v512 = vunpack.c.l.b16 %v158
    %v513 = vunpack.c.h.b16 %v158
    %v514 = vunpack.c.l.b16 %v159
    %v515 = vunpack.c.h.b16 %v159
    %v516 = vunpack.c.l.b16 %v160
    %v517 = vunpack.c.h.b16 %v160
    %v518 = vunpack.c.l.b16 %v161
    %v519 = vunpack.c.h.b16 %v161
    %v520 = vunpack.c.l.b16 %v162
    %v521 = vunpack.c.h.b16 %v162
    %v522 = vunpack.c.l.b16 %v163
    %v523 = vunpack.c.h.b16 %v163
    %v524 = vunpack.c.l.b16 %v164
    %v525 = vunpack.c.h.b16 %v164
    %v526 = vunpack.c.l.b16 %v165
    %v527 = vunpack.c.h.b16 %v165
    %v528 = vunpack.c.l.b16 %v166
    %v529 = vunpack.c.h.b16 %v166
    %v530 = vunpack.c.l.b16 %v167
    %v531 = vunpack.c.h.b16 %v167
    %v532 = vunpack.c.l.b16 %v168
    %v533 = vunpack.c.h.b16 %v168
    %v534 = vunpack.c.l.b16 %v169
    %v535 = vunpack.c.h.b16 %v169
    %v536 = vunpack.c.l.b16 %v170
    %v537 = vunpack.c.h.b16 %v170
    %v538 = vunpack.c.l.b16 %v171
    %v539 = vunpack.c.h.b16 %v171
    %v540 = vunpack.c.l.b16 %v172
    %v541 = vunpack.c.h.b16 %v172
    %v542 = vunpack.c.l.b16 %v173
    %v543 = vunpack.c.h.b16 %v173
    %v544 = vunpack.c.l.b16 %v174
    %v545 = vunpack.c.h.b16 %v174
    %v546 = vunpack.c.l.b16 %v175
    %v547 = vunpack.c.h.b16 %v175
    %v548 = vunpack.c.l.b16 %v176
    %v549 = vunpack.c.h.b16 %v176
    %v550 = vunpack.c.l.b16 %v177
    %v551 = vunpack.c.h.b16 %v177
    %v552 = vunpack.c.l.b16 %v178
    %v553 = vunpack.c.h.b16 %v178
    %v554 = vunpack.c.l.b16 %v179
    %v555 = vunpack.c.h.b16 %v179
    %v556 = vunpack.c.l.b16 %v180
    %v557 = vunpack.c.h.b16 %v180
    %v558 = vunpack.c.l.b16 %v181
    %v559 = vunpack.c.h.b16 %v181
    %v560 = vunpack.c.l.b16 %v182
    %v561 = vunpack.c.h.b16 %v182
    %v562 = vunpack.c.l.b16 %v183
    %v563 = vunpack.c.h.b16 %v183
    %v564 = vunpack.c.l.b16 %v184
    %v565 = vunpack.c.h.b16 %v184
    %v566 = vunpack.c.l.b16 %v185
    %v567 = vunpack.c.h.b16 %v185
    %v568 = vunpack.c.l.b16 %v186
    %v569 = vunpack.c.h.b16 %v186
    %v570 = vunpack.c.l.b16 %v187
    %v571 = vunpack.c.h.b16 %v187
    %v572 = vunpack.c.l.b16 %v188
    %v573 = vunpack.c.h.b16 %v188
    %v574 = vunpack.c.l.b16 %v189
    %v575 = vunpack.c.h.b16 %v189
    %v576 = vunpack.c.l.b16 %v190
    %v577 = vunpack.c.h.b16 %v190
    %v578 = vunpack.c.l.b16 %v191
    %v579 = vunpack.c.h.b16 %v191
    %v580 = vunpack.c.l.b16 %v192
    %v581 = vunpack.c.h.b16 %v192
    %v582 = vunpack.c.l.b16 %v193
    %v583 = vunpack.c.h.b16 %v193
    %v584 = vpack.c.b16 %v330, %v328
    %v585 = vpack.c.b16 %v331, %v329
    %v586 = vpack.c.b16 %v334, %v332
    %v587 = vpack.c.b16 %v335, %v333
    %v588 = vpack.c.b16 %v338, %v336
    %v589 = vpack.c.b16 %v339, %v337
    %v590 = vpack.c.b16 %v342, %v340
    %v591 = vpack.c.b16 %v343, %v341
    %v592 = vpack.c.b16 %v346, %v344
    %v593 = vpack.c.b16 %v347, %v345
    %v594 = vpack.c.b16 %v350, %v348
    %v595 = vpack.c.b16 %v351, %v349
    %v596 = vpack.c.b16 %v354, %v352
    %v597 = vpack.c.b16 %v355, %v353
    %v598 = vpack.c.b16 %v358, %v356
    %v599 = vpack.c.b16 %v359, %v357
    %v600 = vpack.c.b16 %v362, %v360
    %v601 = vpack.c.b16 %v363, %v361
    %v602 = vpack.c.b16 %v366, %v364
    %v603 = vpack.c.b16 %v367, %v365
    %v604 = vpack.c.b16 %v370, %v368
    %v605 = vpack.c.b16 %v371, %v369
    %v606 = vpack.c.b16 %v374, %v372
    %v607 = vpack.c.b16 %v375, %v373
    %v608 = vpack.c.b16 %v378, %v376
    %v609 = vpack.c.b16 %v379, %v377
    %v610 = vpack.c.b16 %v382, %v380
    %v611 = vpack.c.b16 %v383, %v381
    %v612 = vpack.c.b16 %v386, %v384
    %v613 = vpack.c.b16 %v387, %v385
    %v614 = vpack.c.b16 %v390, %v388
    %v615 = vpack.c.b16 %v391, %v389
    %v616 = vpack.c.b16 %v394, %v392
    %v617 = vpack.c.b16 %v395, %v393
    %v618 = vpack.c.b16 %v398, %v396
    %v619 = vpack.c.b16 %v399, %v397
    %v620 = vpack.c.b16 %v402, %v400
    %v621 = vpack.c.b16 %v403, %v401
    %v622 = vpack.c.b16 %v406, %v404
    %v623 = vpack.c.b16 %v407, %v405
    %v624 = vpack.c.b16 %v410, %v408
    %v625 = vpack.c.b16 %v411, %v409
    %v626 = vpack.c.b16 %v414, %v412
    %v627 = vpack.c.b16 %v415, %v413
    %v628 = vpack.c.b16 %v418, %v416
    %v629 = vpack.c.b16 %v419, %v417
    %v630 = vpack.c.b16 %v422, %v420
    %v631 = vpack.c.b16 %v423, %v421
    %v632 = vpack.c.b16 %v426, %v424
    %v633 = vpack.c.b16 %v427, %v425
    %v634 = vpack.c.b16 %v430, %v428
    %v635 = vpack.c.b16 %v431, %v429
    %v636 = vpack.c.b16 %v434, %v432
    %v637 = vpack.c.b16 %v435, %v433
    %v638 = vpack.c.b16 %v438, %v436
    %v639 = vpack.c.b16 %v439, %v437
    %v640 = vpack.c.b16 %v442, %v440
    %v641 = vpack.c.b16 %v443, %v441
    %v642 = vpack.c.b16 %v446, %v444
    %v643 = vpack.c.b16 %v447, %v445
    %v644 = vpack.c.b16 %v450, %v448
    %v645 = vpack.c.b16 %v451, %v449
    %v646 = vpack.c.b16 %v454, %v452
    %v647 = vpack.c.b16 %v455, %v453
    %v648 = vpack.c.b16 %v458, %v456
    %v649 = vpack.c.b16 %v459, %v457
    %v650 = vpack.c.b16 %v462, %v460
    %v651 = vpack.c.b16 %v463, %v461
    %v652 = vpack.c.b16 %v466, %v464
    %v653 = vpack.c.b16 %v467, %v465
    %v654 = vpack.c.b16 %v470, %v468
    %v655 = vpack.c.b16 %v471, %v469
    %v656 = vpack.c.b16 %v474, %v472
    %v657 = vpack.c.b16 %v475, %v473
    %v658 = vpack.c.b16 %v478, %v476
    %v659 = vpack.c.b16 %v479, %v477
    %v660 = vpack.c.b16 %v482, %v480
    %v661 = vpack.c.b16 %v483, %v481
    %v662 = vpack.c.b16 %v486, %v484
    %v663 = vpack.c.b16 %v487, %v485
    %v664 = vpack.c.b16 %v490, %v488
    %v665 = vpack.c.b16 %v491, %v489
    %v666 = vpack.c.b16 %v494, %v492
    %v667 = vpack.c.b16 %v495, %v493
    %v668 = vpack.c.b16 %v498, %v496
    %v669 = vpack.c.b16 %v499, %v497
    %v670 = vpack.c.b16 %v502, %v500
    %v671 = vpack.c.b16 %v503, %v501
    %v672 = vpack.c.b16 %v506, %v504
    %v673 = vpack.c.b16 %v507, %v505
    %v674 = vpack.c.b16 %v510, %v508
    %v675 = vpack.c.b16 %v511, %v509
    %v676 = vpack.c.b16 %v514, %v512
    %v677 = vpack.c.b16 %v515, %v513
    %v678 = vpack.c.b16 %v518, %v516
    %v679 = vpack.c.b16 %v519, %v517
    %v680 = vpack.c.b16 %v522, %v520
    %v681 = vpack.c.b16 %v523, %v521
    %v682 = vpack.c.b16 %v526, %v524
    %v683 = vpack.c.b16 %v527, %v525
    %v684 = vpack.c.b16 %v530, %v528
    %v685 = vpack.c.b16 %v531, %v529
    %v686 = vpack.c.b16 %v534, %v532
    %v687 = vpack.c.b16 %v535, %v533
    %v688 = vpack.c.b16 %v538, %v536
    %v689 = vpack.c.b16 %v539, %v537
    %v690 = vpack.c.b16 %v542, %v540
    %v691 = vpack.c.b16 %v543, %v541
    %v692 = vpack.c.b16 %v546, %v544
    %v693 = vpack.c.b16 %v547, %v545
    %v694 = vpack.c.b16 %v550, %v548
    %v695 = vpack.c.b16 %v551, %v549
    %v696 = vpack.c.b16 %v554, %v552
    %v697 = vpack.c.b16 %v555, %v553
    %v698 = vpack.c.b16 %v558, %v556
    %v699 = vpack.c.b16 %v559, %v557
    %v700 = vpack.c.b16 %v562, %v560
    %v701 = vpack.c.b16 %v563, %v561
    %v702 = vpack.c.b16 %v566, %v564
    %v703 = vpack.c.b16 %v567, %v565
    %v704 = vpack.c.b16 %v570, %v568
    %v705 = vpack.c.b16 %v571, %v569
    %v706 = vpack.c.b16 %v574, %v572
    %v707 = vpack.c.b16 %v575, %v573
    %v708 = vpack.c.b16 %v578, %v576
    %v709 = vpack.c.b16 %v579, %v577
    %v710 = vpack.c.b16 %v582, %v580
    %v711 = vpack.c.b16 %v583, %v581
    %840 = vmatpush.bf16.msra.mxu0 %v598
    %841 = vmatpush.bf16.msra.mxu0 %v596
    %842 = vmatpush.bf16.msra.mxu0 %v594
    %843 = vmatpush.bf16.msra.mxu0 %v592
    %844 = vmatpush.bf16.msra.mxu0 %v590
    %845 = vmatpush.bf16.msra.mxu0 %v588
    %846 = vmatpush.bf16.msra.mxu0 %v586
    %847 = vmatpush.bf16.msra.mxu0 %v584
    %848 = vmatmul.bf16.gmra.mxu0 %v58
    %v849 = vpop.f32.mrf.mxu0
    %v850 = vadd.f32 %v196, %v849
    %v851 = vpop.f32.mrf.mxu0
    %v852 = vadd.f32 %v196, %v851
    %853 = vdwg.mxu0
    %854 = vmatpush.bf16.msra.mxu0 %v614
    %855 = vmatpush.bf16.msra.mxu0 %v612
    %856 = vmatpush.bf16.msra.mxu0 %v610
    %857 = vmatpush.bf16.msra.mxu0 %v608
    %858 = vmatpush.bf16.msra.mxu0 %v606
    %859 = vmatpush.bf16.msra.mxu0 %v604
    %860 = vmatpush.bf16.msra.mxu0 %v602
    %861 = vmatpush.bf16.msra.mxu0 %v600
    %862 = vmatmul.bf16.gmra.mxu0 %v59
    %v863 = vpop.f32.mrf.mxu0
    %v864 = vadd.f32 %v850, %v863
    %v865 = vpop.f32.mrf.mxu0
    %v866 = vadd.f32 %v852, %v865
    %867 = vdwg.mxu0
    %868 = vmatpush.bf16.msra.mxu0 %v630
    %869 = vmatpush.bf16.msra.mxu0 %v628
    %870 = vmatpush.bf16.msra.mxu0 %v626
    %871 = vmatpush.bf16.msra.mxu0 %v624
    %872 = vmatpush.bf16.msra.mxu0 %v622
    %873 = vmatpush.bf16.msra.mxu0 %v620
    %874 = vmatpush.bf16.msra.mxu0 %v618
    %875 = vmatpush.bf16.msra.mxu0 %v616
    %876 = vmatmul.bf16.gmra.mxu0 %v60
    %v877 = vpop.f32.mrf.mxu0
    %v878 = vadd.f32 %v864, %v877
    %v879 = vpop.f32.mrf.mxu0
    %v880 = vadd.f32 %v866, %v879
    %881 = vdwg.mxu0
    %882 = vmatpush.bf16.msra.mxu0 %v646
    %883 = vmatpush.bf16.msra.mxu0 %v644
    %884 = vmatpush.bf16.msra.mxu0 %v642
    %885 = vmatpush.bf16.msra.mxu0 %v640
    %886 = vmatpush.bf16.msra.mxu0 %v638
    %887 = vmatpush.bf16.msra.mxu0 %v636
    %888 = vmatpush.bf16.msra.mxu0 %v634
    %889 = vmatpush.bf16.msra.mxu0 %v632
    %890 = vmatmul.bf16.gmra.mxu0 %v61
    %v891 = vpop.f32.mrf.mxu0
    %v892 = vadd.f32 %v878, %v891
    %v893 = vpop.f32.mrf.mxu0
    %v894 = vadd.f32 %v880, %v893
    %895 = vdwg.mxu0
    %896 = vmatpush.bf16.msra.mxu0 %v662
    %897 = vmatpush.bf16.msra.mxu0 %v660
    %898 = vmatpush.bf16.msra.mxu0 %v658
    %899 = vmatpush.bf16.msra.mxu0 %v656
    %900 = vmatpush.bf16.msra.mxu0 %v654
    %901 = vmatpush.bf16.msra.mxu0 %v652
    %902 = vmatpush.bf16.msra.mxu0 %v650
    %903 = vmatpush.bf16.msra.mxu0 %v648
    %904 = vmatmul.bf16.gmra.mxu0 %v62
    %v905 = vpop.f32.mrf.mxu0
    %v906 = vadd.f32 %v892, %v905
    %v907 = vpop.f32.mrf.mxu0
    %v908 = vadd.f32 %v894, %v907
    %909 = vdwg.mxu0
    %910 = vmatpush.bf16.msra.mxu0 %v678
    %911 = vmatpush.bf16.msra.mxu0 %v676
    %912 = vmatpush.bf16.msra.mxu0 %v674
    %913 = vmatpush.bf16.msra.mxu0 %v672
    %914 = vmatpush.bf16.msra.mxu0 %v670
    %915 = vmatpush.bf16.msra.mxu0 %v668
    %916 = vmatpush.bf16.msra.mxu0 %v666
    %917 = vmatpush.bf16.msra.mxu0 %v664
    %918 = vmatmul.bf16.gmra.mxu0 %v63
    %v919 = vpop.f32.mrf.mxu0
    %v920 = vadd.f32 %v906, %v919
    %v921 = vpop.f32.mrf.mxu0
    %v922 = vadd.f32 %v908, %v921
    %923 = vdwg.mxu0
    %924 = vmatpush.bf16.msra.mxu0 %v694
    %925 = vmatpush.bf16.msra.mxu0 %v692
    %926 = vmatpush.bf16.msra.mxu0 %v690
    %927 = vmatpush.bf16.msra.mxu0 %v688
    %928 = vmatpush.bf16.msra.mxu0 %v686
    %929 = vmatpush.bf16.msra.mxu0 %v684
    %930 = vmatpush.bf16.msra.mxu0 %v682
    %931 = vmatpush.bf16.msra.mxu0 %v680
    %932 = vmatmul.bf16.gmra.mxu0 %v64
    %v933 = vpop.f32.mrf.mxu0
    %v934 = vadd.f32 %v920, %v933
    %v935 = vpop.f32.mrf.mxu0
    %v936 = vadd.f32 %v922, %v935
    %937 = vdwg.mxu0
    %938 = vmatpush.bf16.msra.mxu0 %v710
    %939 = vmatpush.bf16.msra.mxu0 %v708
    %940 = vmatpush.bf16.msra.mxu0 %v706
    %941 = vmatpush.bf16.msra.mxu0 %v704
    %942 = vmatpush.bf16.msra.mxu0 %v702
    %943 = vmatpush.bf16.msra.mxu0 %v700
    %944 = vmatpush.bf16.msra.mxu0 %v698
    %945 = vmatpush.bf16.msra.mxu0 %v696
    %946 = vmatmul.bf16.gmra.mxu0 %v65
    %v947 = vpop.f32.mrf.mxu0
    %v948 = vadd.f32 %v934, %v947
    %v949 = vpop.f32.mrf.mxu0
    %v950 = vadd.f32 %v936, %v949
    %951 = vdwg.mxu0
    %952 = vmatpush.bf16.msra.mxu0 %v599
    %953 = vmatpush.bf16.msra.mxu0 %v597
    %954 = vmatpush.bf16.msra.mxu0 %v595
    %955 = vmatpush.bf16.msra.mxu0 %v593
    %956 = vmatpush.bf16.msra.mxu0 %v591
    %957 = vmatpush.bf16.msra.mxu0 %v589
    %958 = vmatpush.bf16.msra.mxu0 %v587
    %959 = vmatpush.bf16.msra.mxu0 %v585
    %960 = vmatmul.bf16.gmra.mxu0 %v58
    %v961 = vpop.f32.mrf.mxu0
    %v962 = vadd.f32 %v197, %v961
    %v963 = vpop.f32.mrf.mxu0
    %v964 = vadd.f32 %v197, %v963
    %965 = vdwg.mxu0
    %966 = vmatpush.bf16.msra.mxu0 %v615
    %967 = vmatpush.bf16.msra.mxu0 %v613
    %968 = vmatpush.bf16.msra.mxu0 %v611
    %969 = vmatpush.bf16.msra.mxu0 %v609
    %970 = vmatpush.bf16.msra.mxu0 %v607
    %971 = vmatpush.bf16.msra.mxu0 %v605
    %972 = vmatpush.bf16.msra.mxu0 %v603
    %973 = vmatpush.bf16.msra.mxu0 %v601
    %974 = vmatmul.bf16.gmra.mxu0 %v59
    %v975 = vpop.f32.mrf.mxu0
    %v976 = vadd.f32 %v962, %v975
    %v977 = vpop.f32.mrf.mxu0
    %v978 = vadd.f32 %v964, %v977
    %979 = vdwg.mxu0
    %980 = vmatpush.bf16.msra.mxu0 %v631
    %981 = vmatpush.bf16.msra.mxu0 %v629
    %982 = vmatpush.bf16.msra.mxu0 %v627
    %983 = vmatpush.bf16.msra.mxu0 %v625
    %984 = vmatpush.bf16.msra.mxu0 %v623
    %985 = vmatpush.bf16.msra.mxu0 %v621
    %986 = vmatpush.bf16.msra.mxu0 %v619
    %987 = vmatpush.bf16.msra.mxu0 %v617
    %988 = vmatmul.bf16.gmra.mxu0 %v60
    %v989 = vpop.f32.mrf.mxu0
    %v990 = vadd.f32 %v976, %v989
    %v991 = vpop.f32.mrf.mxu0
    %v992 = vadd.f32 %v978, %v991
    %993 = vdwg.mxu0
    %994 = vmatpush.bf16.msra.mxu0 %v647
    %995 = vmatpush.bf16.msra.mxu0 %v645
    %996 = vmatpush.bf16.msra.mxu0 %v643
    %997 = vmatpush.bf16.msra.mxu0 %v641
    %998 = vmatpush.bf16.msra.mxu0 %v639
    %999 = vmatpush.bf16.msra.mxu0 %v637
    %1000 = vmatpush.bf16.msra.mxu0 %v635
    %1001 = vmatpush.bf16.msra.mxu0 %v633
    %1002 = vmatmul.bf16.gmra.mxu0 %v61
    %v1003 = vpop.f32.mrf.mxu0
    %v1004 = vadd.f32 %v990, %v1003
    %v1005 = vpop.f32.mrf.mxu0
    %v1006 = vadd.f32 %v992, %v1005
    %1007 = vdwg.mxu0
    %1008 = vmatpush.bf16.msra.mxu0 %v663
    %1009 = vmatpush.bf16.msra.mxu0 %v661
    %1010 = vmatpush.bf16.msra.mxu0 %v659
    %1011 = vmatpush.bf16.msra.mxu0 %v657
    %1012 = vmatpush.bf16.msra.mxu0 %v655
    %1013 = vmatpush.bf16.msra.mxu0 %v653
    %1014 = vmatpush.bf16.msra.mxu0 %v651
    %1015 = vmatpush.bf16.msra.mxu0 %v649
    %1016 = vmatmul.bf16.gmra.mxu0 %v62
    %v1017 = vpop.f32.mrf.mxu0
    %v1018 = vadd.f32 %v1004, %v1017
    %v1019 = vpop.f32.mrf.mxu0
    %v1020 = vadd.f32 %v1006, %v1019
    %1021 = vdwg.mxu0
    %1022 = vmatpush.bf16.msra.mxu0 %v679
    %1023 = vmatpush.bf16.msra.mxu0 %v677
    %1024 = vmatpush.bf16.msra.mxu0 %v675
    %1025 = vmatpush.bf16.msra.mxu0 %v673
    %1026 = vmatpush.bf16.msra.mxu0 %v671
    %1027 = vmatpush.bf16.msra.mxu0 %v669
    %1028 = vmatpush.bf16.msra.mxu0 %v667
    %1029 = vmatpush.bf16.msra.mxu0 %v665
    %1030 = vmatmul.bf16.gmra.mxu0 %v63
    %v1031 = vpop.f32.mrf.mxu0
    %v1032 = vadd.f32 %v1018, %v1031
    %v1033 = vpop.f32.mrf.mxu0
    %v1034 = vadd.f32 %v1020, %v1033
    %1035 = vdwg.mxu0
    %1036 = vmatpush.bf16.msra.mxu0 %v695
    %1037 = vmatpush.bf16.msra.mxu0 %v693
    %1038 = vmatpush.bf16.msra.mxu0 %v691
    %1039 = vmatpush.bf16.msra.mxu0 %v689
    %1040 = vmatpush.bf16.msra.mxu0 %v687
    %1041 = vmatpush.bf16.msra.mxu0 %v685
    %1042 = vmatpush.bf16.msra.mxu0 %v683
    %1043 = vmatpush.bf16.msra.mxu0 %v681
    %1044 = vmatmul.bf16.gmra.mxu0 %v64
    %v1045 = vpop.f32.mrf.mxu0
    %v1046 = vadd.f32 %v1032, %v1045
    %v1047 = vpop.f32.mrf.mxu0
    %v1048 = vadd.f32 %v1034, %v1047
    %1049 = vdwg.mxu0
    %1050 = vmatpush.bf16.msra.mxu0 %v711
    %1051 = vmatpush.bf16.msra.mxu0 %v709
    %1052 = vmatpush.bf16.msra.mxu0 %v707
    %1053 = vmatpush.bf16.msra.mxu0 %v705
    %1054 = vmatpush.bf16.msra.mxu0 %v703
    %1055 = vmatpush.bf16.msra.mxu0 %v701
    %1056 = vmatpush.bf16.msra.mxu0 %v699
    %1057 = vmatpush.bf16.msra.mxu0 %v697
    %1058 = vmatmul.bf16.gmra.mxu0 %v65
    %v1059 = vpop.f32.mrf.mxu0
    %v1060 = vadd.f32 %v1046, %v1059
    %v1061 = vpop.f32.mrf.mxu0
    %v1062 = vadd.f32 %v1048, %v1061
    %1063 = vdwg.mxu0
    %v1064 = vmax.f32 %v948, 0.0
    %v1065 = vmax.f32 %v1060, 0.0
    %v1066 = vmax.f32 %v950, 0.0
    %v1067 = vmax.f32 %v1062, 0.0
    %v1068 = vpack.c.bf16 %v1066, %v1064
    %v1069 = vpack.c.bf16 %v1067, %v1065
    %v1070 = vld [vmem:[%s3] sm:$0xf]
    %v1071 = vld [vmem:[%s3 + $0x4] sm:$0xf]
    %v1072 = vld [vmem:[%s3 + $0x8] sm:$0xf]
    %v1073 = vld [vmem:[%s3 + $0xc] sm:$0xf]
    %v1074 = vld [vmem:[%s3 + $0x10] sm:$0xf]
    %v1075 = vld [vmem:[%s3 + $0x14] sm:$0xf]
    %v1076 = vld [vmem:[%s3 + $0x18] sm:$0xf]
    %v1077 = vld [vmem:[%s3 + $0x1c] sm:$0xf]
    %v1078 = vld [vmem:[%s3 + $0x20] sm:$0xf]
    %v1079 = vld [vmem:[%s3 + $0x24] sm:$0xf]
    %v1080 = vld [vmem:[%s3 + $0x28] sm:$0xf]
    %v1081 = vld [vmem:[%s3 + $0x2c] sm:$0xf]
    %v1082 = vld [vmem:[%s3 + $0x30] sm:$0xf]
    %v1083 = vld [vmem:[%s3 + $0x34] sm:$0xf]
    %v1084 = vld [vmem:[%s3 + $0x38] sm:$0xf]
    %v1085 = vld [vmem:[%s3 + $0x3c] sm:$0xf]
    %v1086 = vld [vmem:[%s3 + $0x40] sm:$0xf]
    %v1087 = vld [vmem:[%s3 + $0x44] sm:$0xf]
    %v1088 = vld [vmem:[%s3 + $0x48] sm:$0xf]
    %v1089 = vld [vmem:[%s3 + $0x4c] sm:$0xf]
    %v1090 = vld [vmem:[%s3 + $0x50] sm:$0xf]
    %v1091 = vld [vmem:[%s3 + $0x54] sm:$0xf]
    %v1092 = vld [vmem:[%s3 + $0x58] sm:$0xf]
    %v1093 = vld [vmem:[%s3 + $0x5c] sm:$0xf]
    %v1094 = vld [vmem:[%s3 + $0x60] sm:$0xf]
    %v1095 = vld [vmem:[%s3 + $0x64] sm:$0xf]
    %v1096 = vld [vmem:[%s3 + $0x68] sm:$0xf]
    %v1097 = vld [vmem:[%s3 + $0x6c] sm:$0xf]
    %v1098 = vld [vmem:[%s3 + $0x70] sm:$0xf]
    %v1099 = vld [vmem:[%s3 + $0x74] sm:$0xf]
    %v1100 = vld [vmem:[%s3 + $0x78] sm:$0xf]
    %v1101 = vld [vmem:[%s3 + $0x7c] sm:$0xf]
    %v1102 = vld [vmem:[%s4] sm:$0x1]
    %v1104 = vperm.slane %v1102, 0
    %v1138 = vunpack.c.l.b16 %v1070
    %v1139 = vunpack.c.l.b16 %v1071
    %v1140 = vunpack.c.l.b16 %v1072
    %v1141 = vunpack.c.l.b16 %v1073
    %v1142 = vunpack.c.l.b16 %v1074
    %v1143 = vunpack.c.l.b16 %v1075
    %v1144 = vunpack.c.l.b16 %v1076
    %v1145 = vunpack.c.l.b16 %v1077
    %v1146 = vunpack.c.l.b16 %v1078
    %v1147 = vunpack.c.l.b16 %v1079
    %v1148 = vunpack.c.l.b16 %v1080
    %v1149 = vunpack.c.l.b16 %v1081
    %v1150 = vunpack.c.l.b16 %v1082
    %v1151 = vunpack.c.l.b16 %v1083
    %v1152 = vunpack.c.l.b16 %v1084
    %v1153 = vunpack.c.l.b16 %v1085
    %v1154 = vunpack.c.l.b16 %v1086
    %v1155 = vunpack.c.l.b16 %v1087
    %v1156 = vunpack.c.l.b16 %v1088
    %v1157 = vunpack.c.l.b16 %v1089
    %v1158 = vunpack.c.l.b16 %v1090
    %v1159 = vunpack.c.l.b16 %v1091
    %v1160 = vunpack.c.l.b16 %v1092
    %v1161 = vunpack.c.l.b16 %v1093
    %v1162 = vunpack.c.l.b16 %v1094
    %v1163 = vunpack.c.l.b16 %v1095
    %v1164 = vunpack.c.l.b16 %v1096
    %v1165 = vunpack.c.l.b16 %v1097
    %v1166 = vunpack.c.l.b16 %v1098
    %v1167 = vunpack.c.l.b16 %v1099
    %v1168 = vunpack.c.l.b16 %v1100
    %v1169 = vunpack.c.l.b16 %v1101
    %v1170 = vpack.c.b16 %v1139, %v1138
    %v1171 = vpack.c.b16 %v1141, %v1140
    %v1172 = vpack.c.b16 %v1143, %v1142
    %v1173 = vpack.c.b16 %v1145, %v1144
    %v1174 = vpack.c.b16 %v1147, %v1146
    %v1175 = vpack.c.b16 %v1149, %v1148
    %v1176 = vpack.c.b16 %v1151, %v1150
    %v1177 = vpack.c.b16 %v1153, %v1152
    %v1178 = vpack.c.b16 %v1155, %v1154
    %v1179 = vpack.c.b16 %v1157, %v1156
    %v1180 = vpack.c.b16 %v1159, %v1158
    %v1181 = vpack.c.b16 %v1161, %v1160
    %v1182 = vpack.c.b16 %v1163, %v1162
    %v1183 = vpack.c.b16 %v1165, %v1164
    %v1184 = vpack.c.b16 %v1167, %v1166
    %v1185 = vpack.c.b16 %v1169, %v1168
    %1202 = vmatpush.bf16.msra.mxu0 %v1177
    %1203 = vmatpush.bf16.msra.mxu0 %v1176
    %1204 = vmatpush.bf16.msra.mxu0 %v1175
    %1205 = vmatpush.bf16.msra.mxu0 %v1174
    %1206 = vmatpush.bf16.msra.mxu0 %v1173
    %1207 = vmatpush.bf16.msra.mxu0 %v1172
    %1208 = vmatpush.bf16.msra.mxu0 %v1171
    %1209 = vmatpush.bf16.msra.mxu0 %v1170
    %1210 = vmatmul.bf16.gmra.mxu0 %v1068
    %v1211 = vpop.f32.mrf.mxu0
    %v1212 = vadd.f32 %v1104, %v1211
    %v1213 = vpop.f32.mrf.mxu0
    %v1214 = vadd.f32 %v1104, %v1213
    %1215 = vdwg.mxu0
    %1216 = vmatpush.bf16.msra.mxu0 %v1185
    %1217 = vmatpush.bf16.msra.mxu0 %v1184
    %1218 = vmatpush.bf16.msra.mxu0 %v1183
    %1219 = vmatpush.bf16.msra.mxu0 %v1182
    %1220 = vmatpush.bf16.msra.mxu0 %v1181
    %1221 = vmatpush.bf16.msra.mxu0 %v1180
    %1222 = vmatpush.bf16.msra.mxu0 %v1179
    %1223 = vmatpush.bf16.msra.mxu0 %v1178
    %1224 = vmatmul.bf16.gmra.mxu0 %v1069
    %v1225 = vpop.f32.mrf.mxu0
    %v1226 = vadd.f32 %v1212, %v1225
    %v1227 = vpop.f32.mrf.mxu0
    %v1228 = vadd.f32 %v1214, %v1227
    %1229 = vdwg.mxu0
    %v1230 = vmax.f32 %v1226, 0.0
    %v1231 = vmax.f32 %v1228, 0.0
    %v1232 = vpack.c.bf16 %v1231, %v1230
    %v1233 = vld [vmem:[%s5] sm:$0xf]
    %v1234 = vld [vmem:[%s5 + $0x4] sm:$0xf]
    %v1235 = vld [vmem:[%s5 + $0x8] sm:$0xf]
    %v1236 = vld [vmem:[%s5 + $0xc] sm:$0xf]
    %v1237 = vld [vmem:[%s5 + $0x10] sm:$0xf]
    %v1238 = vld [vmem:[%s5 + $0x14] sm:$0xf]
    %v1239 = vld [vmem:[%s5 + $0x18] sm:$0xf]
    %v1240 = vld [vmem:[%s5 + $0x1c] sm:$0xf]
    %v1241 = vld [vmem:[%s5 + $0x20] sm:$0xf]
    %v1242 = vld [vmem:[%s5 + $0x24] sm:$0xf]
    %v1243 = vld [vmem:[%s5 + $0x28] sm:$0xf]
    %v1244 = vld [vmem:[%s5 + $0x2c] sm:$0xf]
    %v1245 = vld [vmem:[%s5 + $0x30] sm:$0xf]
    %v1246 = vld [vmem:[%s5 + $0x34] sm:$0xf]
    %v1247 = vld [vmem:[%s5 + $0x38] sm:$0xf]
    %v1248 = vld [vmem:[%s5 + $0x3c] sm:$0xf]
    %v1249 = vld [vmem:[%s6] sm:$0x1]
    %v1251 = vperm.slane %v1249, 0
    %v1269 = vunpack.c.l.b16 %v1233
    %v1270 = vunpack.c.l.b16 %v1234
    %v1271 = vunpack.c.l.b16 %v1235
    %v1272 = vunpack.c.l.b16 %v1236
    %v1273 = vunpack.c.l.b16 %v1237
    %v1274 = vunpack.c.l.b16 %v1238
    %v1275 = vunpack.c.l.b16 %v1239
    %v1276 = vunpack.c.l.b16 %v1240
    %v1277 = vunpack.c.l.b16 %v1241
    %v1278 = vunpack.c.l.b16 %v1242
    %v1279 = vunpack.c.l.b16 %v1243
    %v1280 = vunpack.c.l.b16 %v1244
    %v1281 = vunpack.c.l.b16 %v1245
    %v1282 = vunpack.c.l.b16 %v1246
    %v1283 = vunpack.c.l.b16 %v1247
    %v1284 = vunpack.c.l.b16 %v1248
    %v1285 = vpack.c.b16 %v1270, %v1269
    %v1286 = vpack.c.b16 %v1272, %v1271
    %v1287 = vpack.c.b16 %v1274, %v1273
    %v1288 = vpack.c.b16 %v1276, %v1275
    %v1289 = vpack.c.b16 %v1278, %v1277
    %v1290 = vpack.c.b16 %v1280, %v1279
    %v1291 = vpack.c.b16 %v1282, %v1281
    %v1292 = vpack.c.b16 %v1284, %v1283
    %1301 = vmatpush.bf16.msra.mxu0 %v1292
    %1302 = vmatpush.bf16.msra.mxu0 %v1291
    %1303 = vmatpush.bf16.msra.mxu0 %v1290
    %1304 = vmatpush.bf16.msra.mxu0 %v1289
    %1305 = vmatpush.bf16.msra.mxu0 %v1288
    %1306 = vmatpush.bf16.msra.mxu0 %v1287
    %1307 = vmatpush.bf16.msra.mxu0 %v1286
    %1308 = vmatpush.bf16.msra.mxu0 %v1285
    %1309 = vmatmul.bf16.gmra.mxu0 %v1232
    %v1310 = vpop.f32.mrf.mxu0
    %v1311 = vadd.f32 %v1251, %v1310
    %v1312 = vpop.f32.mrf.mxu0
    %v1313 = vadd.f32 %v1251, %v1312
    %1314 = vdwg.mxu0
    %1315 = vst [vmem:[%s7] sm:$0xff] %v1311
    %1316 = vst [vmem:[%s7 + $0x8] sm:$0xff] %v1313
    // Predicated region
    $region34: #{kpconv_c_forward.1} parent=1 // pred_check
      _
    $region35: #{kpconv_c_forward.1} parent=1 // pred_check_branch
      %1318 = sbr.rel (0) target = $region37
    $region36: #{kpconv_c_forward.1} parent=1 // pred_region
      _
    $region37: #{kpconv_c_forward.1} parent=1 // pred_fallthru
      _
    // Predicated region
    $region38: #{kpconv_c_forward.1} parent=1 // pred_check
      _
    $region39: #{kpconv_c_forward.1} parent=1 // pred_check_branch
      %1320 = sbr.rel (0) target = $region41
    $region40: #{kpconv_c_forward.1} parent=1 // pred_region
      _
    $region41: #{kpconv_c_forward.1} parent=1 // pred_fallthru
      _
    %1321 = vsyncpa [#allocation3], 1

</llo_original>
